<compile_context>
chip_gen: v5e
topology: v5e:2x2
jax: 0.10.0
libtpu: 0.0.40
codegen_flags: <defaults>
</compile_context>

<pallas_src>
import jax
import jax.numpy as jnp
from jax.experimental import pallas as pl
from jax.experimental.pallas import tpu as pltpu

LANE = 128


def mlp_kernel(x_ref,
               w1_ref, b1_ref,
               w2_ref, b2_ref,
               w3_ref, b3_ref,
               w4_ref, b4_ref,
               w5_ref, b5_ref,
               o_ref):
    """One batch tile per grid step; all (lane-padded) weights fully in VMEM."""
    h = x_ref[...].astype(jnp.float32)

    h = jnp.tanh(jnp.dot(h, w1_ref[...], preferred_element_type=jnp.float32)
                 + b1_ref[...])
    h = jnp.tanh(jnp.dot(h, w2_ref[...], preferred_element_type=jnp.float32)
                 + b2_ref[...])
    h = jnp.tanh(jnp.dot(h, w3_ref[...], preferred_element_type=jnp.float32)
                 + b3_ref[...])
    h = jnp.tanh(jnp.dot(h, w4_ref[...], preferred_element_type=jnp.float32)
                 + b4_ref[...])
    logits = (jnp.dot(h, w5_ref[...], preferred_element_type=jnp.float32)
              + b5_ref[...])
    o_ref[...] = jax.nn.sigmoid(logits).astype(o_ref.dtype)


def _pad_axis_to(arr, axis, target):
    pad = target - arr.shape[axis]
    if pad == 0:
        return arr
    widths = [(0, 0)] * arr.ndim
    widths[axis] = (0, pad)
    return jnp.pad(arr, widths)


def pad_params(params, lane=LANE):
    """Zero-pad each layer's output width to a multiple of `lane` and the next
    layer's input width to match.  Exact: padded hidden units are tanh(0)=0
    and are multiplied by zero-padded weight rows downstream; padded output
    columns are sliced off outside the kernel."""
    padded = []
    prev_out = params[0][0].shape[0]          # input feature dim stays as-is
    for w, b in params:
        out_dim = w.shape[1]
        out_padded = ((out_dim + lane - 1) // lane) * lane
        w_p = _pad_axis_to(_pad_axis_to(w, 0, prev_out), 1, out_padded)
        b_p = _pad_axis_to(b, 1, out_padded)
        padded.append((w_p, b_p))
        prev_out = out_padded
    return padded


def mlp_forward(x, params, *, tile_b=None):
    """params: list of (W, b) with W as (in_dim, out_dim), b as (1, out_dim)."""
    B, in_dim = x.shape
    out_features = params[-1][0].shape[1]

    # Lane-pad hidden/output widths once, outside the kernel.
    pparams = pad_params(params)
    out_padded = pparams[-1][0].shape[1]

    # Single grid step for small batches; 256-row tiles for large batches
    # (matches the v6e/v7x 2x256 MXU and is a multiple of the v5e granule).
    # The batch axis is "parallel" so v7x's two TensorCores can split a
    # multi-step grid.
    if tile_b is None:
        tile_b = min(B, 256)
    grid = (pl.cdiv(B, tile_b),)

    # Batch is tiled; every weight/bias is a full-array block, invariant
    # across grid steps (~200 KB total, negligible vs VMEM).
    def full_spec(arr):
        return pl.BlockSpec(arr.shape, lambda i: (0, 0))

    in_specs = [pl.BlockSpec((tile_b, in_dim), lambda i: (i, 0))]
    flat_params = []
    for (w, b) in pparams:
        in_specs.append(full_spec(w))
        in_specs.append(full_spec(b))
        flat_params.extend([w, b])

    # Lane-dense (tile_b, 128) output store; true out_features sliced outside.
    out_specs = pl.BlockSpec((tile_b, out_padded), lambda i: (i, 0))

    out_full = pl.pallas_call(
        mlp_kernel,
        out_shape=jax.ShapeDtypeStruct((B, out_padded), jnp.float32),
        grid=grid,
        in_specs=in_specs,
        out_specs=out_specs,
        compiler_params=pltpu.CompilerParams(
            dimension_semantics=("parallel",)),
    )(x, *flat_params)
    return out_full[:, :out_features]


def init_linear(key, in_dim, out_dim):
    """Deterministic init mimicking torch.nn.Linear defaults (uniform +-1/sqrt(fan_in))."""
    kw, kb = jax.random.split(key)
    bound = 1.0 / jnp.sqrt(jnp.float32(in_dim))
    # Stored as (in_dim, out_dim) == torch weight transposed, so y = x @ W + b.
    w = jax.random.uniform(kw, (in_dim, out_dim), jnp.float32, -bound, bound)
    b = jax.random.uniform(kb, (1, out_dim), jnp.float32, -bound, bound)
    return w, b


def reference_forward(x, params):
    h = x
    for i, (w, b) in enumerate(params):
        h = h @ w + b
        if i < len(params) - 1:
            h = jnp.tanh(h)
    return jax.nn.sigmoid(h)


# TODO(synk): training loop (Adam, BCELoss, metrics/F1) from the PyTorch module
# is host-side utility code, not part of the forward pass, and is not translated.

if __name__ == "__main__":
    in_features = 16
    out_features = 4
    batch = 16

    key = jax.random.PRNGKey(0)
    keys = jax.random.split(key, 6)

    dims = [(in_features, 10), (10, 128), (128, 128), (128, 128),
            (128, out_features)]
    params = [init_linear(k, di, do) for k, (di, do) in zip(keys[:5], dims)]

    x = jax.random.normal(keys[5], (batch, in_features), jnp.float32)

    out = mlp_forward(x, params)
    out = jax.block_until_ready(out)

    ref = reference_forward(x, params)
    assert out.shape == (batch, out_features), out.shape
    max_err = jnp.max(jnp.abs(out - ref))
    assert jnp.allclose(out, ref, atol=1e-5, rtol=1e-5), f"max err {max_err}"

    print("KERNEL_OK")
</pallas_src>

<mosaic_0001>
module attributes {stable_mosaic.version = 11 : i64} {
  func.func @mlp_kernel(%arg0: i32, %arg1: memref<16x16xf32, #tpu.memory_space<vmem>>, %arg2: memref<16x128xf32, #tpu.memory_space<vmem>>, %arg3: memref<1x128xf32, #tpu.memory_space<vmem>>, %arg4: memref<128x128xf32, #tpu.memory_space<vmem>>, %arg5: memref<1x128xf32, #tpu.memory_space<vmem>>, %arg6: memref<128x128xf32, #tpu.memory_space<vmem>>, %arg7: memref<1x128xf32, #tpu.memory_space<vmem>>, %arg8: memref<128x128xf32, #tpu.memory_space<vmem>>, %arg9: memref<1x128xf32, #tpu.memory_space<vmem>>, %arg10: memref<128x128xf32, #tpu.memory_space<vmem>>, %arg11: memref<1x128xf32, #tpu.memory_space<vmem>>, %arg12: memref<16x128xf32, #tpu.memory_space<vmem>>) attributes {dimension_semantics = [#tpu.dimension_semantics<parallel>], iteration_bounds = array<i64: 1>, scalar_prefetch = 0 : i64, scratch_operands = 0 : i64, tpu.core_type = #tpu.core_type<tc>, window_params = [{transform_indices = @transform_0, window_bounds = array<i64: 16, 16>}, {pipeline_mode = #tpu.pipeline_mode<synchronous>, transform_indices = @transform_1, window_bounds = array<i64: 16, 128>}, {pipeline_mode = #tpu.pipeline_mode<synchronous>, transform_indices = @transform_2, window_bounds = array<i64: 1, 128>}, {pipeline_mode = #tpu.pipeline_mode<synchronous>, transform_indices = @transform_3, window_bounds = array<i64: 128, 128>}, {pipeline_mode = #tpu.pipeline_mode<synchronous>, transform_indices = @transform_4, window_bounds = array<i64: 1, 128>}, {pipeline_mode = #tpu.pipeline_mode<synchronous>, transform_indices = @transform_5, window_bounds = array<i64: 128, 128>}, {pipeline_mode = #tpu.pipeline_mode<synchronous>, transform_indices = @transform_6, window_bounds = array<i64: 1, 128>}, {pipeline_mode = #tpu.pipeline_mode<synchronous>, transform_indices = @transform_7, window_bounds = array<i64: 128, 128>}, {pipeline_mode = #tpu.pipeline_mode<synchronous>, transform_indices = @transform_8, window_bounds = array<i64: 1, 128>}, {pipeline_mode = #tpu.pipeline_mode<synchronous>, transform_indices = @transform_9, window_bounds = array<i64: 128, 128>}, {pipeline_mode = #tpu.pipeline_mode<synchronous>, transform_indices = @transform_10, window_bounds = array<i64: 1, 128>}, {transform_indices = @transform_11, window_bounds = array<i64: 16, 128>}]} {
    %c0 = arith.constant 0 : index
    %c0_0 = arith.constant 0 : index
    %0 = vector.load %arg1[%c0, %c0_0] : memref<16x16xf32, #tpu.memory_space<vmem>>, vector<16x16xf32>
    %c0_1 = arith.constant 0 : index
    %c0_2 = arith.constant 0 : index
    %1 = vector.load %arg2[%c0_1, %c0_2] : memref<16x128xf32, #tpu.memory_space<vmem>>, vector<16x128xf32>
    %cst = arith.constant dense<0.000000e+00> : vector<16x128xf32>
    %2 = tpu.matmul %0, %1, %cst {dimension_numbers = #tpu.dot_dimension_numbers<[1], [0], [0], [1], [0, 0, 1, 1], [], []>} : vector<16x16xf32>, vector<16x128xf32>, vector<16x128xf32> -> vector<16x128xf32>
    %c0_3 = arith.constant 0 : index
    %c0_4 = arith.constant 0 : index
    %3 = vector.load %arg3[%c0_3, %c0_4] : memref<1x128xf32, #tpu.memory_space<vmem>>, vector<1x128xf32>
    %4 = vector.broadcast %3 : vector<1x128xf32> to vector<16x128xf32>
    %5 = arith.addf %2, %4 : vector<16x128xf32>
    %6 = math.tanh %5 : vector<16x128xf32>
    %c0_5 = arith.constant 0 : index
    %c0_6 = arith.constant 0 : index
    %7 = vector.load %arg4[%c0_5, %c0_6] : memref<128x128xf32, #tpu.memory_space<vmem>>, vector<128x128xf32>
    %cst_7 = arith.constant dense<0.000000e+00> : vector<16x128xf32>
    %8 = tpu.matmul %6, %7, %cst_7 {dimension_numbers = #tpu.dot_dimension_numbers<[1], [0], [0], [1], [0, 0, 1, 1], [], []>} : vector<16x128xf32>, vector<128x128xf32>, vector<16x128xf32> -> vector<16x128xf32>
    %c0_8 = arith.constant 0 : index
    %c0_9 = arith.constant 0 : index
    %9 = vector.load %arg5[%c0_8, %c0_9] : memref<1x128xf32, #tpu.memory_space<vmem>>, vector<1x128xf32>
    %10 = vector.broadcast %9 : vector<1x128xf32> to vector<16x128xf32>
    %11 = arith.addf %8, %10 : vector<16x128xf32>
    %12 = math.tanh %11 : vector<16x128xf32>
    %c0_10 = arith.constant 0 : index
    %c0_11 = arith.constant 0 : index
    %13 = vector.load %arg6[%c0_10, %c0_11] : memref<128x128xf32, #tpu.memory_space<vmem>>, vector<128x128xf32>
    %cst_12 = arith.constant dense<0.000000e+00> : vector<16x128xf32>
    %14 = tpu.matmul %12, %13, %cst_12 {dimension_numbers = #tpu.dot_dimension_numbers<[1], [0], [0], [1], [0, 0, 1, 1], [], []>} : vector<16x128xf32>, vector<128x128xf32>, vector<16x128xf32> -> vector<16x128xf32>
    %c0_13 = arith.constant 0 : index
    %c0_14 = arith.constant 0 : index
    %15 = vector.load %arg7[%c0_13, %c0_14] : memref<1x128xf32, #tpu.memory_space<vmem>>, vector<1x128xf32>
    %16 = vector.broadcast %15 : vector<1x128xf32> to vector<16x128xf32>
    %17 = arith.addf %14, %16 : vector<16x128xf32>
    %18 = math.tanh %17 : vector<16x128xf32>
    %c0_15 = arith.constant 0 : index
    %c0_16 = arith.constant 0 : index
    %19 = vector.load %arg8[%c0_15, %c0_16] : memref<128x128xf32, #tpu.memory_space<vmem>>, vector<128x128xf32>
    %cst_17 = arith.constant dense<0.000000e+00> : vector<16x128xf32>
    %20 = tpu.matmul %18, %19, %cst_17 {dimension_numbers = #tpu.dot_dimension_numbers<[1], [0], [0], [1], [0, 0, 1, 1], [], []>} : vector<16x128xf32>, vector<128x128xf32>, vector<16x128xf32> -> vector<16x128xf32>
    %c0_18 = arith.constant 0 : index
    %c0_19 = arith.constant 0 : index
    %21 = vector.load %arg9[%c0_18, %c0_19] : memref<1x128xf32, #tpu.memory_space<vmem>>, vector<1x128xf32>
    %22 = vector.broadcast %21 : vector<1x128xf32> to vector<16x128xf32>
    %23 = arith.addf %20, %22 : vector<16x128xf32>
    %24 = math.tanh %23 : vector<16x128xf32>
    %c0_20 = arith.constant 0 : index
    %c0_21 = arith.constant 0 : index
    %25 = vector.load %arg10[%c0_20, %c0_21] : memref<128x128xf32, #tpu.memory_space<vmem>>, vector<128x128xf32>
    %cst_22 = arith.constant dense<0.000000e+00> : vector<16x128xf32>
    %26 = tpu.matmul %24, %25, %cst_22 {dimension_numbers = #tpu.dot_dimension_numbers<[1], [0], [0], [1], [0, 0, 1, 1], [], []>} : vector<16x128xf32>, vector<128x128xf32>, vector<16x128xf32> -> vector<16x128xf32>
    %c0_23 = arith.constant 0 : index
    %c0_24 = arith.constant 0 : index
    %27 = vector.load %arg11[%c0_23, %c0_24] : memref<1x128xf32, #tpu.memory_space<vmem>>, vector<1x128xf32>
    %28 = vector.broadcast %27 : vector<1x128xf32> to vector<16x128xf32>
    %29 = arith.addf %26, %28 : vector<16x128xf32>
    %30 = arith.negf %29 : vector<16x128xf32>
    %31 = math.exp %30 : vector<16x128xf32>
    %cst_25 = arith.constant 1.000000e+00 : f32
    %32 = vector.broadcast %cst_25 : f32 to vector<16x128xf32>
    %33 = arith.addf %32, %31 : vector<16x128xf32>
    %34 = arith.divf %32, %33 : vector<16x128xf32>
    %c0_26 = arith.constant 0 : index
    %c0_27 = arith.constant 0 : index
    %35 = vector.load %arg12[%c0_26, %c0_27] : memref<16x128xf32, #tpu.memory_space<vmem>>, vector<16x128xf32>
    tpu.vector_store %arg12[%c0_26, %c0_27], %34 {strides = array<i32>} : memref<16x128xf32, #tpu.memory_space<vmem>>, vector<16x128xf32>,
    return
  }
  func.func @transform_0(%arg0: i32) -> (i32, i32) {
    %c0_i32 = arith.constant 0 : i32
    %c0_i32_0 = arith.constant 0 : i32
    return %arg0, %c0_i32 : i32, i32
  }
  func.func @transform_1(%arg0: i32) -> (i32, i32) {
    %c0_i32 = arith.constant 0 : i32
    %c0_i32_0 = arith.constant 0 : i32
    %c0_i32_1 = arith.constant 0 : i32
    return %c0_i32, %c0_i32_0 : i32, i32
  }
  func.func @transform_2(%arg0: i32) -> (i32, i32) {
    %c0_i32 = arith.constant 0 : i32
    %c0_i32_0 = arith.constant 0 : i32
    %c0_i32_1 = arith.constant 0 : i32
    return %c0_i32, %c0_i32_0 : i32, i32
  }
  func.func @transform_3(%arg0: i32) -> (i32, i32) {
    %c0_i32 = arith.constant 0 : i32
    %c0_i32_0 = arith.constant 0 : i32
    %c0_i32_1 = arith.constant 0 : i32
    return %c0_i32, %c0_i32_0 : i32, i32
  }
  func.func @transform_4(%arg0: i32) -> (i32, i32) {
    %c0_i32 = arith.constant 0 : i32
    %c0_i32_0 = arith.constant 0 : i32
    %c0_i32_1 = arith.constant 0 : i32
    return %c0_i32, %c0_i32_0 : i32, i32
  }
  func.func @transform_5(%arg0: i32) -> (i32, i32) {
    %c0_i32 = arith.constant 0 : i32
    %c0_i32_0 = arith.constant 0 : i32
    %c0_i32_1 = arith.constant 0 : i32
    return %c0_i32, %c0_i32_0 : i32, i32
  }
  func.func @transform_6(%arg0: i32) -> (i32, i32) {
    %c0_i32 = arith.constant 0 : i32
    %c0_i32_0 = arith.constant 0 : i32
    %c0_i32_1 = arith.constant 0 : i32
    return %c0_i32, %c0_i32_0 : i32, i32
  }
  func.func @transform_7(%arg0: i32) -> (i32, i32) {
    %c0_i32 = arith.constant 0 : i32
    %c0_i32_0 = arith.constant 0 : i32
    %c0_i32_1 = arith.constant 0 : i32
    return %c0_i32, %c0_i32_0 : i32, i32
  }
  func.func @transform_8(%arg0: i32) -> (i32, i32) {
    %c0_i32 = arith.constant 0 : i32
    %c0_i32_0 = arith.constant 0 : i32
    %c0_i32_1 = arith.constant 0 : i32
    return %c0_i32, %c0_i32_0 : i32, i32
  }
  func.func @transform_9(%arg0: i32) -> (i32, i32) {
    %c0_i32 = arith.constant 0 : i32
    %c0_i32_0 = arith.constant 0 : i32
    %c0_i32_1 = arith.constant 0 : i32
    return %c0_i32, %c0_i32_0 : i32, i32
  }
  func.func @transform_10(%arg0: i32) -> (i32, i32) {
    %c0_i32 = arith.constant 0 : i32
    %c0_i32_0 = arith.constant 0 : i32
    %c0_i32_1 = arith.constant 0 : i32
    return %c0_i32, %c0_i32_0 : i32, i32
  }
  func.func @transform_11(%arg0: i32) -> (i32, i32) {
    %c0_i32 = arith.constant 0 : i32
    %c0_i32_0 = arith.constant 0 : i32
    return %arg0, %c0_i32 : i32, i32
  }
}

</mosaic_0001>

<llo_original>
// kernel: tpu_custom_call.1
$region0: #{tpu_custom_call.1}
  #allocation0 [shape = 'u32[]', space=smem, size = 0x4, offset = 0x4, fixed_abs, tag = 'smem constant byte address 0x4 - core index']
  #allocation1 [shape = 'u32[72,128]{1,0:T(1,128)}', space=vmem, size = 0x9000, scoped, tag = 'internal scratch']
  %s0 = inlined_call_operand.hbm [shape: f32[16,16], index: 0, kind: input, shape index: {}]
  %s1 = inlined_call_operand.hbm [shape: f32[16,128], index: 1, kind: input, shape index: {}]
  %s2 = inlined_call_operand.vmem [shape: f32[1,128], index: 2, kind: input, shape index: {}]
  %s3 = inlined_call_operand.hbm [shape: f32[128,128], index: 3, kind: input, shape index: {}]
  %s4 = inlined_call_operand.vmem [shape: f32[1,128], index: 4, kind: input, shape index: {}]
  %s5 = inlined_call_operand.hbm [shape: f32[128,128], index: 5, kind: input, shape index: {}]
  %s6 = inlined_call_operand.vmem [shape: f32[1,128], index: 6, kind: input, shape index: {}]
  %s7 = inlined_call_operand.hbm [shape: f32[128,128], index: 7, kind: input, shape index: {}]
  %s8 = inlined_call_operand.vmem [shape: f32[1,128], index: 8, kind: input, shape index: {}]
  %s9 = inlined_call_operand.hbm [shape: f32[128,128], index: 9, kind: input, shape index: {}]
  %s10 = inlined_call_operand.vmem [shape: f32[1,128], index: 10, kind: input, shape index: {}]
  %s11 = inlined_call_operand.hbm [shape: f32[16,128], index: 11, kind: output, shape index: {}]
  %s12 = sld [smem:[#allocation0]]
  $region78: #{tpu_custom_call.1} parent=0
    _
  %s14 = ssub.s32 1, %s12
  %s15 = scalar_select 0, %s14, %s12
  $region1: #{tpu_custom_call.1} parent=0
    #allocation2 [shape = 'u8[8192]{0}', space=vmem, size = 0x2000, scoped, tag = 'input window, operand 0, single buffered']
    #allocation3 [shape = 's32[1]{0}', space=sflag, size = 0x4, scoped, tag = 'scoped memory for tpu_custom_call.1']
    #allocation4 [shape = 's32[1]{0}', space=sflag, size = 0x4, scoped, tag = 'scoped memory for tpu_custom_call.1']
    #allocation5 [shape = 'u8[8192]{0}', space=vmem, size = 0x2000, scoped, tag = 'input window, operand 1, single buffered']
    #allocation6 [shape = 's32[1]{0}', space=sflag, size = 0x4, scoped, tag = 'scoped memory for tpu_custom_call.1']
    #allocation7 [shape = 'u8[65536]{0}', space=vmem, size = 0x10000, scoped, tag = 'input window, operand 3, single buffered']
    #allocation8 [shape = 'u8[65536]{0}', space=vmem, size = 0x10000, scoped, tag = 'input window, operand 5, single buffered']
    #allocation9 [shape = 's32[1]{0}', space=sflag, size = 0x4, scoped, tag = 'scoped memory for tpu_custom_call.1']
    #allocation10 [shape = 'u8[65536]{0}', space=vmem, size = 0x10000, scoped, tag = 'input window, operand 7, single buffered']
    #allocation11 [shape = 'u8[65536]{0}', space=vmem, size = 0x10000, scoped, tag = 'input window, operand 9, single buffered']
    #allocation12 [shape = 's32[1]{0}', space=sflag, size = 0x4, scoped, tag = 'scoped memory for tpu_custom_call.1']
    #allocation13 [shape = 'u8[8192]{0}', space=vmem, size = 0x2000, scoped, tag = 'output window, operand 0, single buffered']
    %16 = vsyncpa [#allocation3], 0
    %17 = vsyncpa [#allocation6], 0
    %18 = vsyncpa [#allocation9], 0
    %19 = vsyncpa [#allocation12], 0
    %20 = vsyncpa [#allocation4], 0
    // Predicated region
    $region2: #{tpu_custom_call.1} parent=1 // pred_check
      _
    $region3: #{tpu_custom_call.1} parent=1 // pred_check_branch
      %22 = sbr.rel (0) target = $region5
    $region4: #{tpu_custom_call.1} parent=1 // pred_region
      %24 = vsyncadd [#allocation3], 0
      %s25 = sshll.u32 %s0, 4
      %s26 = int_to_ptr.hbm [resolvable:$true] %s25
      %s27 = sshll.u32 [#allocation2], 4
      %s28 = int_to_ptr.vmem [resolvable:$true] %s27
      %33 = dma.hbm_to_vmem [thread:$0]  %s26, 256, %s28, [#allocation3], 128, 128, 8
    $region5: #{tpu_custom_call.1} parent=1 // pred_fallthru
      _
    // Predicated region
    $region6: #{tpu_custom_call.1} parent=1 // pred_check
      _
    $region7: #{tpu_custom_call.1} parent=1 // pred_check_branch
      %35 = sbr.rel (0) target = $region9
    $region8: #{tpu_custom_call.1} parent=1 // pred_region
      %37 = vsyncadd [#allocation6], 0
      %s38 = sshll.u32 %s1, 4
      %s39 = int_to_ptr.hbm [resolvable:$true] %s38
      %s40 = sshll.u32 [#allocation5], 4
      %s41 = int_to_ptr.vmem [resolvable:$true] %s40
      %46 = dma.hbm_to_vmem [thread:$0]  %s39, 256, %s41, [#allocation6], 128, 128, 8
    $region9: #{tpu_custom_call.1} parent=1 // pred_fallthru
      _
    // Predicated region
    $region10: #{tpu_custom_call.1} parent=1 // pred_check
      _
    $region11: #{tpu_custom_call.1} parent=1 // pred_check_branch
      %48 = sbr.rel (0) target = $region13
    $region12: #{tpu_custom_call.1} parent=1 // pred_region
      _
    $region13: #{tpu_custom_call.1} parent=1 // pred_fallthru
      _
    // Predicated region
    $region14: #{tpu_custom_call.1} parent=1 // pred_check
      _
    $region15: #{tpu_custom_call.1} parent=1 // pred_check_branch
      %50 = sbr.rel (0) target = $region17
    $region16: #{tpu_custom_call.1} parent=1 // pred_region
      %52 = vsyncadd [#allocation6], 0
      %s53 = sshll.u32 %s3, 4
      %s54 = int_to_ptr.hbm [resolvable:$true] %s53
      %s55 = sshll.u32 [#allocation7], 4
      %s56 = int_to_ptr.vmem [resolvable:$true] %s55
      %61 = dma.hbm_to_vmem [thread:$0]  %s54, 2048, %s56, [#allocation6], 128, 128, 8
    $region17: #{tpu_custom_call.1} parent=1 // pred_fallthru
      _
    // Predicated region
    $region18: #{tpu_custom_call.1} parent=1 // pred_check
      _
    $region19: #{tpu_custom_call.1} parent=1 // pred_check_branch
      %63 = sbr.rel (0) target = $region21
    $region20: #{tpu_custom_call.1} parent=1 // pred_region
      _
    $region21: #{tpu_custom_call.1} parent=1 // pred_fallthru
      _
    // Predicated region
    $region22: #{tpu_custom_call.1} parent=1 // pred_check
      _
    $region23: #{tpu_custom_call.1} parent=1 // pred_check_branch
      %65 = sbr.rel (0) target = $region25
    $region24: #{tpu_custom_call.1} parent=1 // pred_region
      %67 = vsyncadd [#allocation9], 0
      %s68 = sshll.u32 %s5, 4
      %s69 = int_to_ptr.hbm [resolvable:$true] %s68
      %s70 = sshll.u32 [#allocation8], 4
      %s71 = int_to_ptr.vmem [resolvable:$true] %s70
      %76 = dma.hbm_to_vmem [thread:$0]  %s69, 2048, %s71, [#allocation9], 128, 128, 8
    $region25: #{tpu_custom_call.1} parent=1 // pred_fallthru
      _
    // Predicated region
    $region26: #{tpu_custom_call.1} parent=1 // pred_check
      _
    $region27: #{tpu_custom_call.1} parent=1 // pred_check_branch
      %78 = sbr.rel (0) target = $region29
    $region28: #{tpu_custom_call.1} parent=1 // pred_region
      _
    $region29: #{tpu_custom_call.1} parent=1 // pred_fallthru
      _
    // Predicated region
    $region30: #{tpu_custom_call.1} parent=1 // pred_check
      _
    $region31: #{tpu_custom_call.1} parent=1 // pred_check_branch
      %80 = sbr.rel (0) target = $region33
    $region32: #{tpu_custom_call.1} parent=1 // pred_region
      %82 = vsyncadd [#allocation9], 0
      %s83 = sshll.u32 %s7, 4
      %s84 = int_to_ptr.hbm [resolvable:$true] %s83
      %s85 = sshll.u32 [#allocation10], 4
      %s86 = int_to_ptr.vmem [resolvable:$true] %s85
      %91 = dma.hbm_to_vmem [thread:$0]  %s84, 2048, %s86, [#allocation9], 128, 128, 8
    $region33: #{tpu_custom_call.1} parent=1 // pred_fallthru
      _
    // Predicated region
    $region34: #{tpu_custom_call.1} parent=1 // pred_check
      _
    $region35: #{tpu_custom_call.1} parent=1 // pred_check_branch
      %93 = sbr.rel (0) target = $region37
    $region36: #{tpu_custom_call.1} parent=1 // pred_region
      _
    $region37: #{tpu_custom_call.1} parent=1 // pred_fallthru
      _
    // Predicated region
    $region38: #{tpu_custom_call.1} parent=1 // pred_check
      _
    $region39: #{tpu_custom_call.1} parent=1 // pred_check_branch
      %95 = sbr.rel (0) target = $region41
    $region40: #{tpu_custom_call.1} parent=1 // pred_region
      %97 = vsyncadd [#allocation12], 0
      %s98 = sshll.u32 %s9, 4
      %s99 = int_to_ptr.hbm [resolvable:$true] %s98
      %s100 = sshll.u32 [#allocation11], 4
      %s101 = int_to_ptr.vmem [resolvable:$true] %s100
      %106 = dma.hbm_to_vmem [thread:$0]  %s99, 2048, %s101, [#allocation12], 128, 128, 8
    $region41: #{tpu_custom_call.1} parent=1 // pred_fallthru
      _
    // Predicated region
    $region42: #{tpu_custom_call.1} parent=1 // pred_check
      _
    $region43: #{tpu_custom_call.1} parent=1 // pred_check_branch
      %108 = sbr.rel (0) target = $region45
    $region44: #{tpu_custom_call.1} parent=1 // pred_region
      _
    $region45: #{tpu_custom_call.1} parent=1 // pred_fallthru
      _
    // Predicated region
    $region46: #{tpu_custom_call.1} parent=1 // pred_check
      _
    $region47: #{tpu_custom_call.1} parent=1 // pred_check_branch
      %110 = sbr.rel (0) target = $region49
    $region48: #{tpu_custom_call.1} parent=1 // pred_region
      %112 = dma.done [#allocation3], 256
    $region49: #{tpu_custom_call.1} parent=1 // pred_fallthru
      _
    // Predicated region
    $region50: #{tpu_custom_call.1} parent=1 // pred_check
      _
    $region51: #{tpu_custom_call.1} parent=1 // pred_check_branch
      %114 = sbr.rel (0) target = $region53
    $region52: #{tpu_custom_call.1} parent=1 // pred_region
      %116 = dma.done [#allocation6], 256
    $region53: #{tpu_custom_call.1} parent=1 // pred_fallthru
      _
    // Predicated region
    $region54: #{tpu_custom_call.1} parent=1 // pred_check
      _
    $region55: #{tpu_custom_call.1} parent=1 // pred_check_branch
      %118 = sbr.rel (0) target = $region57
    $region56: #{tpu_custom_call.1} parent=1 // pred_region
      %120 = dma.done [#allocation6], 2048
    $region57: #{tpu_custom_call.1} parent=1 // pred_fallthru
      _
    // Predicated region
    $region58: #{tpu_custom_call.1} parent=1 // pred_check
      _
    $region59: #{tpu_custom_call.1} parent=1 // pred_check_branch
      %122 = sbr.rel (0) target = $region61
    $region60: #{tpu_custom_call.1} parent=1 // pred_region
      %124 = dma.done [#allocation9], 2048
    $region61: #{tpu_custom_call.1} parent=1 // pred_fallthru
      _
    // Predicated region
    $region62: #{tpu_custom_call.1} parent=1 // pred_check
      _
    $region63: #{tpu_custom_call.1} parent=1 // pred_check_branch
      %126 = sbr.rel (0) target = $region65
    $region64: #{tpu_custom_call.1} parent=1 // pred_region
      %128 = dma.done [#allocation9], 2048
    $region65: #{tpu_custom_call.1} parent=1 // pred_fallthru
      _
    // Predicated region
    $region66: #{tpu_custom_call.1} parent=1 // pred_check
      _
    $region67: #{tpu_custom_call.1} parent=1 // pred_check_branch
      %130 = sbr.rel (0) target = $region69
    $region68: #{tpu_custom_call.1} parent=1 // pred_region
      %132 = dma.done [#allocation12], 2048
    $region69: #{tpu_custom_call.1} parent=1 // pred_fallthru
      _
    %v133 = vld [vmem:[#allocation2] sm:$0xff]
    %v134 = vld [vmem:[#allocation2 + $0x8] sm:$0xff]
    %v135 = vld [vmem:[#allocation5] sm:$0xff]
    %v136 = vld [vmem:[#allocation5 + $0x8] sm:$0xff]
    %v137 = vld [vmem:[%s2] sm:$0x1]
    %v139 = vperm.slane %v137, 0
    %vm141 = vcmask 130048
    %v143 = vsel %vm141, %v133, 0
    %v146 = vsel %vm141, %v134, 0
    %148 = vmatpush.msra.mxu0 0.0
    %149 = vmatpush.msra.mxu0 0.0
    %150 = vmatpush.msra.mxu0 0.0
    %151 = vmatpush.msra.mxu0 0.0
    %152 = vmatpush.msra.mxu0 0.0
    %153 = vmatpush.msra.mxu0 0.0
    %154 = vmatpush.msra.mxu0 0.0
    %155 = vmatpush.msra.mxu0 0.0
    %156 = vmatpush.msra.mxu0 0.0
    %157 = vmatpush.msra.mxu0 0.0
    %158 = vmatpush.msra.mxu0 0.0
    %159 = vmatpush.msra.mxu0 0.0
    %160 = vmatpush.msra.mxu0 0.0
    %161 = vmatpush.msra.mxu0 0.0
    %162 = vmatpush.msra.mxu0 %v136
    %163 = vmatpush.msra.mxu0 %v135
    %164 = vmatmul.f32.gmra.mxu0 %v143
    %v165 = vpop.f32.mrf.mxu0
    %v166 = vadd.f32 %v139, %v165
    %167 = vmatmul.f32.gmra.mxu0 %v146
    %v168 = vpop.f32.mrf.mxu0
    %v169 = vadd.f32 %v139, %v168
    %170 = vdwg.mxu0
    %v171 = vtanh.pop %v166
    %v172 = vtanh.pop %v169
    %v173 = vld [vmem:[#allocation7] sm:$0xff]
    %v174 = vld [vmem:[#allocation7 + $0x8] sm:$0xff]
    %v175 = vld [vmem:[#allocation7 + $0x10] sm:$0xff]
    %v176 = vld [vmem:[#allocation7 + $0x18] sm:$0xff]
    %v177 = vld [vmem:[#allocation7 + $0x20] sm:$0xff]
    %v178 = vld [vmem:[#allocation7 + $0x28] sm:$0xff]
    %v179 = vld [vmem:[#allocation7 + $0x30] sm:$0xff]
    %v180 = vld [vmem:[#allocation7 + $0x38] sm:$0xff]
    %v181 = vld [vmem:[#allocation7 + $0x40] sm:$0xff]
    %v182 = vld [vmem:[#allocation7 + $0x48] sm:$0xff]
    %v183 = vld [vmem:[#allocation7 + $0x50] sm:$0xff]
    %v184 = vld [vmem:[#allocation7 + $0x58] sm:$0xff]
    %v185 = vld [vmem:[#allocation7 + $0x60] sm:$0xff]
    %v186 = vld [vmem:[#allocation7 + $0x68] sm:$0xff]
    %v187 = vld [vmem:[#allocation7 + $0x70] sm:$0xff]
    %v188 = vld [vmem:[#allocation7 + $0x78] sm:$0xff]
    %v189 = vld [vmem:[%s4] sm:$0x1]
    %v191 = vperm.slane %v189, 0
    %193 = vmatpush.msra.mxu0 %v188
    %194 = vmatpush.msra.mxu0 %v187
    %195 = vmatpush.msra.mxu0 %v186
    %196 = vmatpush.msra.mxu0 %v185
    %197 = vmatpush.msra.mxu0 %v184
    %198 = vmatpush.msra.mxu0 %v183
    %199 = vmatpush.msra.mxu0 %v182
    %200 = vmatpush.msra.mxu0 %v181
    %201 = vmatpush.msra.mxu0 %v180
    %202 = vmatpush.msra.mxu0 %v179
    %203 = vmatpush.msra.mxu0 %v178
    %204 = vmatpush.msra.mxu0 %v177
    %205 = vmatpush.msra.mxu0 %v176
    %206 = vmatpush.msra.mxu0 %v175
    %207 = vmatpush.msra.mxu0 %v174
    %208 = vmatpush.msra.mxu0 %v173
    %209 = vmatmul.f32.gmra.mxu0 %v171
    %v210 = vpop.f32.mrf.mxu0
    %v211 = vadd.f32 %v191, %v210
    %212 = vmatmul.f32.gmra.mxu0 %v172
    %v213 = vpop.f32.mrf.mxu0
    %v214 = vadd.f32 %v191, %v213
    %215 = vdwg.mxu0
    %v216 = vtanh.pop %v211
    %v217 = vtanh.pop %v214
    %v218 = vld [vmem:[#allocation8] sm:$0xff]
    %v219 = vld [vmem:[#allocation8 + $0x8] sm:$0xff]
    %v220 = vld [vmem:[#allocation8 + $0x10] sm:$0xff]
    %v221 = vld [vmem:[#allocation8 + $0x18] sm:$0xff]
    %v222 = vld [vmem:[#allocation8 + $0x20] sm:$0xff]
    %v223 = vld [vmem:[#allocation8 + $0x28] sm:$0xff]
    %v224 = vld [vmem:[#allocation8 + $0x30] sm:$0xff]
    %v225 = vld [vmem:[#allocation8 + $0x38] sm:$0xff]
    %v226 = vld [vmem:[#allocation8 + $0x40] sm:$0xff]
    %v227 = vld [vmem:[#allocation8 + $0x48] sm:$0xff]
    %v228 = vld [vmem:[#allocation8 + $0x50] sm:$0xff]
    %v229 = vld [vmem:[#allocation8 + $0x58] sm:$0xff]
    %v230 = vld [vmem:[#allocation8 + $0x60] sm:$0xff]
    %v231 = vld [vmem:[#allocation8 + $0x68] sm:$0xff]
    %v232 = vld [vmem:[#allocation8 + $0x70] sm:$0xff]
    %v233 = vld [vmem:[#allocation8 + $0x78] sm:$0xff]
    %v234 = vld [vmem:[%s6] sm:$0x1]
    %v236 = vperm.slane %v234, 0
    %238 = vmatpush.msra.mxu0 %v233
    %239 = vmatpush.msra.mxu0 %v232
    %240 = vmatpush.msra.mxu0 %v231
    %241 = vmatpush.msra.mxu0 %v230
    %242 = vmatpush.msra.mxu0 %v229
    %243 = vmatpush.msra.mxu0 %v228
    %244 = vmatpush.msra.mxu0 %v227
    %245 = vmatpush.msra.mxu0 %v226
    %246 = vmatpush.msra.mxu0 %v225
    %247 = vmatpush.msra.mxu0 %v224
    %248 = vmatpush.msra.mxu0 %v223
    %249 = vmatpush.msra.mxu0 %v222
    %250 = vmatpush.msra.mxu0 %v221
    %251 = vmatpush.msra.mxu0 %v220
    %252 = vmatpush.msra.mxu0 %v219
    %253 = vmatpush.msra.mxu0 %v218
    %254 = vmatmul.f32.gmra.mxu0 %v216
    %v255 = vpop.f32.mrf.mxu0
    %v256 = vadd.f32 %v236, %v255
    %257 = vmatmul.f32.gmra.mxu0 %v217
    %v258 = vpop.f32.mrf.mxu0
    %v259 = vadd.f32 %v236, %v258
    %260 = vdwg.mxu0
    %v261 = vtanh.pop %v256
    %v262 = vtanh.pop %v259
    %v263 = vld [vmem:[#allocation10] sm:$0xff]
    %v264 = vld [vmem:[#allocation10 + $0x8] sm:$0xff]
    %v265 = vld [vmem:[#allocation10 + $0x10] sm:$0xff]
    %v266 = vld [vmem:[#allocation10 + $0x18] sm:$0xff]
    %v267 = vld [vmem:[#allocation10 + $0x20] sm:$0xff]
    %v268 = vld [vmem:[#allocation10 + $0x28] sm:$0xff]
    %v269 = vld [vmem:[#allocation10 + $0x30] sm:$0xff]
    %v270 = vld [vmem:[#allocation10 + $0x38] sm:$0xff]
    %v271 = vld [vmem:[#allocation10 + $0x40] sm:$0xff]
    %v272 = vld [vmem:[#allocation10 + $0x48] sm:$0xff]
    %v273 = vld [vmem:[#allocation10 + $0x50] sm:$0xff]
    %v274 = vld [vmem:[#allocation10 + $0x58] sm:$0xff]
    %v275 = vld [vmem:[#allocation10 + $0x60] sm:$0xff]
    %v276 = vld [vmem:[#allocation10 + $0x68] sm:$0xff]
    %v277 = vld [vmem:[#allocation10 + $0x70] sm:$0xff]
    %v278 = vld [vmem:[#allocation10 + $0x78] sm:$0xff]
    %v279 = vld [vmem:[%s8] sm:$0x1]
    %v281 = vperm.slane %v279, 0
    %283 = vmatpush.msra.mxu0 %v278
    %284 = vmatpush.msra.mxu0 %v277
    %285 = vmatpush.msra.mxu0 %v276
    %286 = vmatpush.msra.mxu0 %v275
    %287 = vmatpush.msra.mxu0 %v274
    %288 = vmatpush.msra.mxu0 %v273
    %289 = vmatpush.msra.mxu0 %v272
    %290 = vmatpush.msra.mxu0 %v271
    %291 = vmatpush.msra.mxu0 %v270
    %292 = vmatpush.msra.mxu0 %v269
    %293 = vmatpush.msra.mxu0 %v268
    %294 = vmatpush.msra.mxu0 %v267
    %295 = vmatpush.msra.mxu0 %v266
    %296 = vmatpush.msra.mxu0 %v265
    %297 = vmatpush.msra.mxu0 %v264
    %298 = vmatpush.msra.mxu0 %v263
    %299 = vmatmul.f32.gmra.mxu0 %v261
    %v300 = vpop.f32.mrf.mxu0
    %v301 = vadd.f32 %v281, %v300
    %302 = vmatmul.f32.gmra.mxu0 %v262
    %v303 = vpop.f32.mrf.mxu0
    %v304 = vadd.f32 %v281, %v303
    %305 = vdwg.mxu0
    %v306 = vtanh.pop %v301
    %v307 = vtanh.pop %v304
    %v308 = vld [vmem:[#allocation11] sm:$0xff]
    %v309 = vld [vmem:[#allocation11 + $0x8] sm:$0xff]
    %v310 = vld [vmem:[#allocation11 + $0x10] sm:$0xff]
    %v311 = vld [vmem:[#allocation11 + $0x18] sm:$0xff]
    %v312 = vld [vmem:[#allocation11 + $0x20] sm:$0xff]
    %v313 = vld [vmem:[#allocation11 + $0x28] sm:$0xff]
    %v314 = vld [vmem:[#allocation11 + $0x30] sm:$0xff]
    %v315 = vld [vmem:[#allocation11 + $0x38] sm:$0xff]
    %v316 = vld [vmem:[#allocation11 + $0x40] sm:$0xff]
    %v317 = vld [vmem:[#allocation11 + $0x48] sm:$0xff]
    %v318 = vld [vmem:[#allocation11 + $0x50] sm:$0xff]
    %v319 = vld [vmem:[#allocation11 + $0x58] sm:$0xff]
    %v320 = vld [vmem:[#allocation11 + $0x60] sm:$0xff]
    %v321 = vld [vmem:[#allocation11 + $0x68] sm:$0xff]
    %v322 = vld [vmem:[#allocation11 + $0x70] sm:$0xff]
    %v323 = vld [vmem:[#allocation11 + $0x78] sm:$0xff]
    %v324 = vld [vmem:[%s10] sm:$0x1]
    %v326 = vperm.slane %v324, 0
    %328 = vmatpush.msra.mxu0 %v323
    %329 = vmatpush.msra.mxu0 %v322
    %330 = vmatpush.msra.mxu0 %v321
    %331 = vmatpush.msra.mxu0 %v320
    %332 = vmatpush.msra.mxu0 %v319
    %333 = vmatpush.msra.mxu0 %v318
    %334 = vmatpush.msra.mxu0 %v317
    %335 = vmatpush.msra.mxu0 %v316
    %336 = vmatpush.msra.mxu0 %v315
    %337 = vmatpush.msra.mxu0 %v314
    %338 = vmatpush.msra.mxu0 %v313
    %339 = vmatpush.msra.mxu0 %v312
    %340 = vmatpush.msra.mxu0 %v311
    %341 = vmatpush.msra.mxu0 %v310
    %342 = vmatpush.msra.mxu0 %v309
    %343 = vmatpush.msra.mxu0 %v308
    %344 = vmatmul.f32.gmra.mxu0 %v306
    %v345 = vpop.f32.mrf.mxu0
    %v346 = vadd.f32 %v326, %v345
    %347 = vmatmul.f32.gmra.mxu0 %v307
    %v348 = vpop.f32.mrf.mxu0
    %v349 = vadd.f32 %v326, %v348
    %350 = vdwg.mxu0
    %v351 = vxor.u32 %v346, 2147483648
    %v352 = vxor.u32 %v349, 2147483648
    %v353 = vmul.f32 %v351, 1.442695
    %v354 = vpow.pop %v353
    %v355 = vmul.f32 %v352, 1.442695
    %v356 = vpow.pop %v355
    %v357 = vadd.f32 %v354, 1.0
    %v358 = vadd.f32 %v356, 1.0
    %v359 = vrcp.pop %v357
    %v360 = vmul.f32 %v357, %v359
    %v361 = vsub.f32 1.0, %v360
    %v362 = vmul.f32 %v359, %v361
    %v363 = vadd.f32 %v359, %v362
    %vm364 = vweird.f32 %v357
    %vm365 = vweird.f32 %v359
    %vm366 = vmor %vm364, %vm365
    %v367 = vsel %vm366, %v359, %v363
    %v368 = vand.u32 2147483647, %v357
    %vm369 = vcmp.eq.f32.partialorder %v368, 8.507059e+37
    %v370 = vand.u32 %v357, 2147483648
    %v371 = vor.u32 1.1754944e-38, %v370
    %v372 = vsel %vm369, %v371, %v367
    %v373 = vmul.f32 1.0, %v372
    %v374 = vrcp.pop %v358
    %v375 = vmul.f32 %v358, %v374
    %v376 = vsub.f32 1.0, %v375
    %v377 = vmul.f32 %v374, %v376
    %v378 = vadd.f32 %v374, %v377
    %vm379 = vweird.f32 %v358
    %vm380 = vweird.f32 %v374
    %vm381 = vmor %vm379, %vm380
    %v382 = vsel %vm381, %v374, %v378
    %v383 = vand.u32 2147483647, %v358
    %vm384 = vcmp.eq.f32.partialorder %v383, 8.507059e+37
    %v385 = vand.u32 %v358, 2147483648
    %v386 = vor.u32 1.1754944e-38, %v385
    %v387 = vsel %vm384, %v386, %v382
    %v388 = vmul.f32 1.0, %v387
    %389 = vst [vmem:[#allocation13] sm:$0xff] %v373
    %390 = vst [vmem:[#allocation13 + $0x8] sm:$0xff] %v388
    // Predicated region
    $region70: #{tpu_custom_call.1} parent=1 // pred_check
      _
    $region71: #{tpu_custom_call.1} parent=1 // pred_check_branch
      %392 = sbr.rel (0) target = $region73
    $region72: #{tpu_custom_call.1} parent=1 // pred_region
      %394 = vsyncadd [#allocation4], 0
      %s395 = sshll.u32 [#allocation13], 4
      %s396 = int_to_ptr.vmem [resolvable:$true] %s395
      %s397 = sshll.u32 %s11, 4
      %s398 = int_to_ptr.hbm [resolvable:$true] %s397
      %403 = dma.vmem_to_hbm [thread:$0]  %s396, 256, %s398, [#allocation4], 128, 128, 8
    $region73: #{tpu_custom_call.1} parent=1 // pred_fallthru
      _
    // Predicated region
    $region74: #{tpu_custom_call.1} parent=1 // pred_check
      _
    $region75: #{tpu_custom_call.1} parent=1 // pred_check_branch
      %405 = sbr.rel (0) target = $region77
    $region76: #{tpu_custom_call.1} parent=1 // pred_region
      %407 = dma.done [#allocation4], 256
    $region77: #{tpu_custom_call.1} parent=1 // pred_fallthru
      _
    %408 = vsyncpa [#allocation3], 1
    %409 = vsyncpa [#allocation6], 1
    %410 = vsyncpa [#allocation9], 1
    %411 = vsyncpa [#allocation12], 1
    %412 = vsyncpa [#allocation4], 1

</llo_original>
